<compile_context>
chip_gen: v6e
topology: v6e:2x2x1
jax: 0.10.0
libtpu: 0.0.40
codegen_flags: <defaults>
</compile_context>

<pallas_src>
import numpy as np
import jax
import jax.numpy as jnp
from jax.experimental import pallas as pl
from jax.experimental.pallas import tpu as pltpu  # noqa: F401

# ---- model configuration (small, consistent with the module) ----------------
B = 2            # batch
T = 16           # seq_len
C = 4            # enc_in (channels)
NUM_CLASS = 4
HIDDEN = 32      # hidden width of the XiNet surrogate
MA_KERNEL = 5    # DLinear moving-average window (odd)

TC = T * C                   # 64 flattened input features
SUBLANE = 8
H_PAD = 128                  # XiNet hidden block padded to a full lane tile
NC_PAD = 128                 # output block padded to a full lane tile
W_COLS = H_PAD + NC_PAD      # 256 columns in the fused weight slab
BIAS_ROWS = SUBLANE          # sublane-aligned bias block inside the slab
SLAB_ROWS = TC + BIAS_ROWS + W_COLS   # 64 + 8 + 256 = 328


def moving_avg_matrix(seq_len: int, kernel: int) -> np.ndarray:
    """(T, T) matrix M with trend = x @ M  ==  AvgPool1d(kernel, stride=1) with
    replicate padding on both ends (exactly DLinear's series_decomp)."""
    pad = (kernel - 1) // 2
    m = np.zeros((seq_len, seq_len), np.float64)
    for t in range(seq_len):
        for d in range(-pad, pad + 1):
            s = min(max(t + d, 0), seq_len - 1)
            m[s, t] += 1.0 / kernel
    return m


# ---- fused Pallas kernel -----------------------------------------------------
def merge_kernel(x_ref,      # (B_pad, TC)          flattened, sublane-padded input
                 par_ref,    # (SLAB_ROWS, W_COLS)  packed parameter slab
                 out_ref):   # (B_pad, NC_PAD)      lane-dense padded output
    # packed slab layout (rows):
    #   [0, TC)                   : W_big  = [W1 | 0 | W_dl' | 0]   (TC, 256)
    #   [TC, TC+BIAS_ROWS)        : bias row at row TC, rest zero padding
    #   [TC+BIAS_ROWS, SLAB_ROWS) : W2_ext (256, 256); cols [0,128) used:
    #                               rows [0,H)=W2@Wfc_xi, rows [128,128+NC)=I
    w_big = par_ref[0:TC, :]                                 # (TC, 256)
    bias = par_ref[TC:TC + 1, :]                             # (1, 256)
    w2 = par_ref[TC + BIAS_ROWS:SLAB_ROWS, 0:NC_PAD]         # (256, 128)

    z = jnp.dot(x_ref[...], w_big,
                preferred_element_type=jnp.float32) + bias   # (B_pad, 256)

    # Fused epilogue: ReLU only on the XiNet block (lanes < H_PAD), then one
    # MXU matmul whose identity rows pass the DLinear block straight through.
    col = jax.lax.broadcasted_iota(jnp.int32, z.shape, dimension=1)
    g = jnp.where(col < H_PAD, jnp.maximum(z, 0.0), z)

    out_ref[...] = jnp.dot(g, w2,
                           preferred_element_type=jnp.float32).astype(out_ref.dtype)


# ---- wrapper -----------------------------------------------------------------
def merge_model_forward(x_enc, x_mark_enc, x_dec, x_mark_dec, kparams, mask=None):
    del x_mark_enc, x_dec, x_mark_dec, mask  # unused by these branches
    b_sz, t, c = x_enc.shape
    # contiguous flatten — no transpose; weight rows were permuted at fold time
    x_flat = x_enc.reshape(b_sz, t * c).astype(jnp.float32)

    # sublane-align the batch so loads/stores/MXU rows are unmasked
    b_pad = ((b_sz + SUBLANE - 1) // SUBLANE) * SUBLANE
    if b_pad != b_sz:
        x_flat = jnp.pad(x_flat, ((0, b_pad - b_sz), (0, 0)))

    # grid-less call: one step, both operands resident whole in VMEM (<0.5 MB)
    out_pad = pl.pallas_call(
        merge_kernel,
        out_shape=jax.ShapeDtypeStruct((b_pad, NC_PAD), jnp.float32),
    )(x_flat, kparams["slab"])
    # TODO(synk): for large production batches, grid over batch with (TB, TC)
    # blocks (TB a multiple of 8) and mark that axis "parallel" (v7x dual-TC);
    # size TB against v7x's 64 MiB VMEM, not v5e/v6e's 128 MiB.
    return out_pad[:b_sz, :NUM_CLASS]


# ---- deterministic parameter init (original, un-folded parameterization) ------
def init_params(key):
    ks = jax.random.split(key, 11)
    s = 0.1
    return {
        "M": jnp.asarray(moving_avg_matrix(T, MA_KERNEL), jnp.float32),
        "ws": jax.random.normal(ks[0], (T, T), jnp.float32) * s,
        "bs": jax.random.normal(ks[1], (1, T), jnp.float32) * s,
        "wt": jax.random.normal(ks[2], (T, T), jnp.float32) * s,
        "bt": jax.random.normal(ks[3], (1, T), jnp.float32) * s,
        "wp": jax.random.normal(ks[4], (C, T, NUM_CLASS), jnp.float32) * s,
        "bp": jax.random.normal(ks[5], (1, NUM_CLASS), jnp.float32) * s,
        "w1": jax.random.normal(ks[6], (C, T, HIDDEN), jnp.float32) * s,
        "b1": jax.random.normal(ks[7], (1, HIDDEN), jnp.float32) * s,
        "w2": jax.random.normal(ks[8], (HIDDEN, NUM_CLASS), jnp.float32) * s,
        "b2": jax.random.normal(ks[9], (1, NUM_CLASS), jnp.float32) * s,
        # merge fc: weight for the concatenated (xi, dl) features, split in two
        "wfc_xi": jax.random.normal(ks[10], (NUM_CLASS, NUM_CLASS), jnp.float32) * s,
        "wfc_dl": jax.random.normal(jax.random.fold_in(ks[10], 1),
                                    (NUM_CLASS, NUM_CLASS), jnp.float32) * s,
        "bfc": jax.random.normal(jax.random.fold_in(ks[10], 2),
                                 (1, NUM_CLASS), jnp.float32) * s,
    }


# ---- host-side algebraic folding + packing (float64, exact) --------------------
def fold_params(p):
    f = lambda a: np.asarray(a, np.float64)
    M, ws, bs, wt, bt = f(p["M"]), f(p["ws"]), f(p["bs"]), f(p["wt"]), f(p["bt"])
    wp, bp = f(p["wp"]), f(p["bp"])
    w1, b1, w2, b2 = f(p["w1"]), f(p["b1"]), f(p["w2"]), f(p["b2"])
    wfc_xi, wfc_dl, bfc = f(p["wfc_xi"]), f(p["wfc_dl"]), f(p["bfc"])

    eye = np.eye(T)
    # enc_c = x_c @ W_enc + b_enc  (series decomposition + both linears folded)
    w_enc = (eye - M) @ ws + M @ wt                         # (T, T)
    b_enc = bs + bt                                         # (1, T)

    # per-channel DLinear weight W_enc @ wp[c], flattened to match the
    # time-major x_enc.reshape(B, T*C) ordering (row index = t*C + c)
    w_dl_3d = np.einsum("tu,cuo->cto", w_enc, wp)           # (C, T, NC)
    w_dl_flat = np.transpose(w_dl_3d, (1, 0, 2)).reshape(T * C, NUM_CLASS)
    w_dl_fold = w_dl_flat @ wfc_dl                          # (T*C, NC) merge-fc folded

    w1_flat = np.transpose(w1, (1, 0, 2)).reshape(T * C, HIDDEN)   # (T*C, H)
    w2_fold = w2 @ wfc_xi                                   # (H, NC)

    # constant bias of the fused output
    dl_bias = (b_enc @ wp.sum(axis=0) + bp) @ wfc_dl        # (1, NC)
    b_const = dl_bias + b2 @ wfc_xi + bfc                   # (1, NC)

    # -------- pack everything into ONE lane/sublane-aligned slab --------------
    slab = np.zeros((SLAB_ROWS, W_COLS), np.float64)
    # W_big block: XiNet columns [0,H), DLinear columns [H_PAD, H_PAD+NC)
    slab[:TC, :HIDDEN] = w1_flat
    slab[:TC, H_PAD:H_PAD + NUM_CLASS] = w_dl_fold
    # bias row (sublane-aligned block of 8 rows, data in the first row)
    slab[TC, :HIDDEN] = b1[0]
    slab[TC, H_PAD:H_PAD + NUM_CLASS] = b_const[0]
    # W2_ext block: [W2@Wfc_xi over hidden rows ; identity over DLinear rows]
    w2_off = TC + BIAS_ROWS
    slab[w2_off:w2_off + HIDDEN, :NUM_CLASS] = w2_fold
    slab[w2_off + H_PAD:w2_off + H_PAD + NUM_CLASS, :NUM_CLASS] = np.eye(NUM_CLASS)

    # TODO(synk): on v6e/v7x the slab can be stored as bfloat16 (bf16-native
    # MXU, half the DMA bytes); kept f32 here so the 2e-4 check stays tight.
    return {"slab": jnp.asarray(slab, jnp.float32)}


# ---- pure-JAX reference (original un-folded math, high precision) ---------------
def ref_forward(x_enc, p):
    hi = jax.lax.Precision.HIGHEST
    xt = jnp.transpose(x_enc, (0, 2, 1)).astype(jnp.float32)       # (B, C, T)
    trend = jnp.einsum("bcs,st->bct", xt, p["M"], precision=hi)
    seas = xt - trend
    enc = (jnp.einsum("bcs,so->bco", seas, p["ws"], precision=hi) + p["bs"][0]
           + jnp.einsum("bcs,so->bco", trend, p["wt"], precision=hi) + p["bt"][0])
    dl = jnp.einsum("bct,cto->bo", enc, p["wp"], precision=hi) + p["bp"][0]
    h = jnp.maximum(
        jnp.einsum("bct,cth->bh", xt, p["w1"], precision=hi) + p["b1"][0], 0.0)
    xi = jnp.dot(h, p["w2"], precision=hi) + p["b2"][0]
    return (jnp.dot(xi, p["wfc_xi"], precision=hi)
            + jnp.dot(dl, p["wfc_dl"], precision=hi) + p["bfc"][0])


if __name__ == "__main__":
    key = jax.random.PRNGKey(0)
    k_x, k_p = jax.random.split(key)

    x_enc = jax.random.normal(k_x, (B, T, C), jnp.float32)
    x_mark_enc = jnp.zeros((B, T, 4), jnp.float32)
    x_dec = jnp.zeros((B, T, C), jnp.float32)
    x_mark_dec = jnp.zeros((B, T, 4), jnp.float32)

    params = init_params(k_p)
    kparams = fold_params(params)

    out = merge_model_forward(x_enc, x_mark_enc, x_dec, x_mark_dec, kparams)
    out = jax.block_until_ready(out)

    ref = jax.block_until_ready(ref_forward(x_enc, params))
    np.testing.assert_allclose(np.asarray(out), np.asarray(ref),
                               rtol=2e-4, atol=2e-4)
    assert out.shape == (B, NUM_CLASS)
    print("KERNEL_OK")
</pallas_src>

<mosaic_0001>
module attributes {stable_mosaic.version = 11 : i64} {
  func.func @merge_kernel(%arg0: memref<8x64xf32, #tpu.memory_space<vmem>>, %arg1: memref<328x256xf32, #tpu.memory_space<vmem>>, %arg2: memref<8x128xf32, #tpu.memory_space<vmem>>) attributes {dimension_semantics = [], scalar_prefetch = 0 : i64, scratch_operands = 0 : i64, tpu.core_type = #tpu.core_type<tc>} {
    %c0 = arith.constant 0 : index
    %c0_0 = arith.constant 0 : index
    %0 = vector.load %arg1[%c0, %c0_0] : memref<328x256xf32, #tpu.memory_space<vmem>>, vector<64x256xf32>
    %c64 = arith.constant 64 : index
    %c0_1 = arith.constant 0 : index
    %1 = vector.load %arg1[%c64, %c0_1] : memref<328x256xf32, #tpu.memory_space<vmem>>, vector<1x256xf32>
    %c72 = arith.constant 72 : index
    %c0_2 = arith.constant 0 : index
    %2 = vector.load %arg1[%c72, %c0_2] : memref<328x256xf32, #tpu.memory_space<vmem>>, vector<256x128xf32>
    %c0_3 = arith.constant 0 : index
    %c0_4 = arith.constant 0 : index
    %3 = vector.load %arg0[%c0_3, %c0_4] : memref<8x64xf32, #tpu.memory_space<vmem>>, vector<8x64xf32>
    %cst = arith.constant dense<0.000000e+00> : vector<8x256xf32>
    %4 = tpu.matmul %3, %0, %cst {dimension_numbers = #tpu.dot_dimension_numbers<[1], [0], [0], [1], [0, 0, 1, 1], [], []>} : vector<8x64xf32>, vector<64x256xf32>, vector<8x256xf32> -> vector<8x256xf32>
    %5 = vector.broadcast %1 : vector<1x256xf32> to vector<8x256xf32>
    %6 = arith.addf %4, %5 : vector<8x256xf32>
    %7 = tpu.iota {dimensions = array<i32: 1>} : vector<8x256xi32>
    %c128_i32 = arith.constant 128 : i32
    %8 = vector.broadcast %c128_i32 : i32 to vector<8x256xi32>
    %9 = arith.cmpi slt, %7, %8 : vector<8x256xi32>
    %cst_5 = arith.constant 0.000000e+00 : f32
    %10 = vector.broadcast %cst_5 : f32 to vector<8x256xf32>
    %11 = arith.maximumf %6, %10 : vector<8x256xf32>
    %12 = arith.select %9, %11, %6 : vector<8x256xi1>, vector<8x256xf32>
    %cst_6 = arith.constant dense<0.000000e+00> : vector<8x128xf32>
    %13 = tpu.matmul %12, %2, %cst_6 {dimension_numbers = #tpu.dot_dimension_numbers<[1], [0], [0], [1], [0, 0, 1, 1], [], []>} : vector<8x256xf32>, vector<256x128xf32>, vector<8x128xf32> -> vector<8x128xf32>
    %c0_7 = arith.constant 0 : index
    %c0_8 = arith.constant 0 : index
    %14 = vector.load %arg2[%c0_7, %c0_8] : memref<8x128xf32, #tpu.memory_space<vmem>>, vector<8x128xf32>
    tpu.vector_store %arg2[%c0_7, %c0_8], %13 {strides = array<i32>} : memref<8x128xf32, #tpu.memory_space<vmem>>, vector<8x128xf32>,
    return
  }
}

</mosaic_0001>

<llo_original>
// kernel: tpu_custom_call.1
$region0: #{tpu_custom_call.1}
  #allocation0 [shape = 'u32[]', space=smem, size = 0x4, offset = 0x4, fixed_abs, tag = 'smem constant byte address 0x4 - core index']
  #allocation1 [shape = 'u32[144,128]{1,0:T(1,128)}', space=vmem, size = 0x12000, scoped, tag = 'internal scratch']
  %s0 = inlined_call_operand.hbm [shape: f32[8,64], index: 0, kind: input, shape index: {}]
  %s1 = inlined_call_operand.hbm [shape: f32[328,256], index: 1, kind: input, shape index: {}]
  %s2 = inlined_call_operand.hbm [shape: f32[8,128], index: 2, kind: output, shape index: {}]
  %s3 = sld [smem:[#allocation0]]
  $region26: #{tpu_custom_call.1} parent=0
    _
  %s5 = ssub.s32 1, %s3
  %s6 = scalar_select 0, %s5, %s3
  $region1: #{tpu_custom_call.1} parent=0
    #allocation2 [shape = 'u8[4096]{0}', space=vmem, size = 0x1000, scoped, tag = 'input window, operand 0, single buffered']
    #allocation3 [shape = 's32[1]{0}', space=sflag, size = 0x4, scoped, tag = 'scoped memory for tpu_custom_call.1']
    #allocation4 [shape = 's32[1]{0}', space=sflag, size = 0x4, scoped, tag = 'scoped memory for tpu_custom_call.1']
    #allocation5 [shape = 'u8[335872]{0}', space=vmem, size = 0x52000, scoped, tag = 'input window, operand 1, single buffered']
    #allocation6 [shape = 's32[1]{0}', space=sflag, size = 0x4, scoped, tag = 'scoped memory for tpu_custom_call.1']
    #allocation7 [shape = 'u8[4096]{0}', space=vmem, size = 0x1000, scoped, tag = 'output window, operand 0, single buffered']
    %7 = vsyncpa [#allocation3], 0
    %8 = vsyncpa [#allocation6], 0
    %9 = vsyncpa [#allocation4], 0
    // Predicated region
    $region2: #{tpu_custom_call.1} parent=1 // pred_check
      _
    $region3: #{tpu_custom_call.1} parent=1 // pred_check_branch
      %11 = sbr.rel (0) target = $region5
    $region4: #{tpu_custom_call.1} parent=1 // pred_region
      %s13 = ssub.s32 128, 128
      %14 = vsyncadd [#allocation3], %s13
      %s16 = sshll.u32 [#allocation2], 4
      %s17 = int_to_ptr.vmem [resolvable:$true] %s16
      %19 = dma.hbm_to_vmem [thread:$0]  %s0, 128, %s17, [#allocation3]
    $region5: #{tpu_custom_call.1} parent=1 // pred_fallthru
      _
    // Predicated region
    $region6: #{tpu_custom_call.1} parent=1 // pred_check
      _
    $region7: #{tpu_custom_call.1} parent=1 // pred_check_branch
      %21 = sbr.rel (0) target = $region9
    $region8: #{tpu_custom_call.1} parent=1 // pred_region
      %s23 = ssub.s32 10496, 10496
      %24 = vsyncadd [#allocation6], %s23
      %s25 = sshll.u32 [#allocation5], 4
      %s26 = int_to_ptr.vmem [resolvable:$true] %s25
      %31 = dma.hbm_to_vmem [thread:$0]  %s1, 10496, %s26, [#allocation6], 256, 256, 16
    $region9: #{tpu_custom_call.1} parent=1 // pred_fallthru
      _
    // Predicated region
    $region10: #{tpu_custom_call.1} parent=1 // pred_check
      _
    $region11: #{tpu_custom_call.1} parent=1 // pred_check_branch
      %33 = sbr.rel (0) target = $region13
    $region12: #{tpu_custom_call.1} parent=1 // pred_region
      %34 = dma.done [#allocation3], 128
    $region13: #{tpu_custom_call.1} parent=1 // pred_fallthru
      _
    // Predicated region
    $region14: #{tpu_custom_call.1} parent=1 // pred_check
      _
    $region15: #{tpu_custom_call.1} parent=1 // pred_check_branch
      %36 = sbr.rel (0) target = $region17
    $region16: #{tpu_custom_call.1} parent=1 // pred_region
      %37 = dma.done [#allocation6], 10496
    $region17: #{tpu_custom_call.1} parent=1 // pred_fallthru
      _
    %v38 = vld [vmem:[#allocation5] sm:$0xff]
    %v39 = vld [vmem:[#allocation5 + $0x8] sm:$0xff]
    %v40 = vld [vmem:[#allocation5 + $0x10] sm:$0xff]
    %v41 = vld [vmem:[#allocation5 + $0x18] sm:$0xff]
    %v42 = vld [vmem:[#allocation5 + $0x20] sm:$0xff]
    %v43 = vld [vmem:[#allocation5 + $0x28] sm:$0xff]
    %v44 = vld [vmem:[#allocation5 + $0x30] sm:$0xff]
    %v45 = vld [vmem:[#allocation5 + $0x38] sm:$0xff]
    %v46 = vld [vmem:[#allocation5 + $0x40] sm:$0xff]
    %v47 = vld [vmem:[#allocation5 + $0x48] sm:$0xff]
    %v48 = vld [vmem:[#allocation5 + $0x50] sm:$0xff]
    %v49 = vld [vmem:[#allocation5 + $0x58] sm:$0xff]
    %v50 = vld [vmem:[#allocation5 + $0x60] sm:$0xff]
    %v51 = vld [vmem:[#allocation5 + $0x68] sm:$0xff]
    %v52 = vld [vmem:[#allocation5 + $0x70] sm:$0xff]
    %v53 = vld [vmem:[#allocation5 + $0x78] sm:$0xff]
    %s54 = scalar_lea.vmem [#allocation5], 128
    %v55 = vld [vmem:[%s54] ss:$8 sm:$0x3]
    %v56 = vld [vmem:[#allocation5 + $0x90] sm:$0xff]
    %v57 = vld [vmem:[#allocation5 + $0xa0] sm:$0xff]
    %v58 = vld [vmem:[#allocation5 + $0xb0] sm:$0xff]
    %v59 = vld [vmem:[#allocation5 + $0xc0] sm:$0xff]
    %v60 = vld [vmem:[#allocation5 + $0xd0] sm:$0xff]
    %v61 = vld [vmem:[#allocation5 + $0xe0] sm:$0xff]
    %v62 = vld [vmem:[#allocation5 + $0xf0] sm:$0xff]
    %v63 = vld [vmem:[#allocation5 + $0x100] sm:$0xff]
    %v64 = vld [vmem:[#allocation5 + $0x110] sm:$0xff]
    %v65 = vld [vmem:[#allocation5 + $0x120] sm:$0xff]
    %v66 = vld [vmem:[#allocation5 + $0x130] sm:$0xff]
    %v67 = vld [vmem:[#allocation5 + $0x140] sm:$0xff]
    %v68 = vld [vmem:[#allocation5 + $0x150] sm:$0xff]
    %v69 = vld [vmem:[#allocation5 + $0x160] sm:$0xff]
    %v70 = vld [vmem:[#allocation5 + $0x170] sm:$0xff]
    %v71 = vld [vmem:[#allocation5 + $0x180] sm:$0xff]
    %v72 = vld [vmem:[#allocation5 + $0x190] sm:$0xff]
    %v73 = vld [vmem:[#allocation5 + $0x1a0] sm:$0xff]
    %v74 = vld [vmem:[#allocation5 + $0x1b0] sm:$0xff]
    %v75 = vld [vmem:[#allocation5 + $0x1c0] sm:$0xff]
    %v76 = vld [vmem:[#allocation5 + $0x1d0] sm:$0xff]
    %v77 = vld [vmem:[#allocation5 + $0x1e0] sm:$0xff]
    %v78 = vld [vmem:[#allocation5 + $0x1f0] sm:$0xff]
    %v79 = vld [vmem:[#allocation5 + $0x200] sm:$0xff]
    %v80 = vld [vmem:[#allocation5 + $0x210] sm:$0xff]
    %v81 = vld [vmem:[#allocation5 + $0x220] sm:$0xff]
    %v82 = vld [vmem:[#allocation5 + $0x230] sm:$0xff]
    %v83 = vld [vmem:[#allocation5 + $0x240] sm:$0xff]
    %v84 = vld [vmem:[#allocation5 + $0x250] sm:$0xff]
    %v85 = vld [vmem:[#allocation5 + $0x260] sm:$0xff]
    %v86 = vld [vmem:[#allocation5 + $0x270] sm:$0xff]
    %v87 = vld [vmem:[#allocation5 + $0x280] sm:$0xff]
    %v88 = vld [vmem:[#allocation2] sm:$0xff]
    %v90 = vlaneseq
    %v91 = vshrl.u32 %v90, 7
    %v92 = vsub.s32 0, %v91
    %v93 = vrot.slane %v55, %v92
    %v94 = vlaneseq
    %v95 = vshrl.u32 %v94, 7
    %v96 = vsub.s32 1, %v95
    %v97 = vrot.slane %v55, %v96
    %vm100 = vcmask 523264
    %v102 = vsel %vm100, %v88, 0
    %104 = vmatprep.subr.mxu0 0.0
    %105 = vmatpush1.msra.mxu0 0.0
    %106 = vmatprep.subr.mxu0 0.0
    %107 = vmatpush1.msra.mxu0 0.0
    %108 = vmatprep.subr.mxu0 0.0
    %109 = vmatpush1.msra.mxu0 0.0
    %110 = vmatprep.subr.mxu0 0.0
    %111 = vmatpush1.msra.mxu0 0.0
    %112 = vmatprep.subr.mxu0 0.0
    %113 = vmatpush1.msra.mxu0 0.0
    %114 = vmatprep.subr.mxu0 0.0
    %115 = vmatpush1.msra.mxu0 0.0
    %116 = vmatprep.subr.mxu0 0.0
    %117 = vmatpush1.msra.mxu0 0.0
    %118 = vmatprep.subr.mxu0 0.0
    %119 = vmatpush1.msra.mxu0 0.0
    %120 = vmatprep.subr.mxu0 %v53
    %121 = vmatpush1.msra.mxu0 %v52
    %122 = vmatprep.subr.mxu0 %v51
    %123 = vmatpush1.msra.mxu0 %v50
    %124 = vmatprep.subr.mxu0 %v49
    %125 = vmatpush1.msra.mxu0 %v48
    %126 = vmatprep.subr.mxu0 %v47
    %127 = vmatpush1.msra.mxu0 %v46
    %128 = vmatprep.subr.mxu0 %v45
    %129 = vmatpush1.msra.mxu0 %v44
    %130 = vmatprep.subr.mxu0 %v43
    %131 = vmatpush1.msra.mxu0 %v42
    %132 = vmatprep.subr.mxu0 %v41
    %133 = vmatpush1.msra.mxu0 %v40
    %134 = vmatprep.subr.mxu0 %v39
    %135 = vmatpush1.msra.mxu0 %v38
    %136 = vmatprep.subr.mxu0 0.0
    %137 = vmatpush2.msra.mxu0 0.0
    %138 = vmatprep.subr.mxu0 0.0
    %139 = vmatpush2.msra.mxu0 0.0
    %140 = vmatprep.subr.mxu0 0.0
    %141 = vmatpush2.msra.mxu0 0.0
    %142 = vmatprep.subr.mxu0 0.0
    %143 = vmatpush2.msra.mxu0 0.0
    %144 = vmatprep.subr.mxu0 0.0
    %145 = vmatpush2.msra.mxu0 0.0
    %146 = vmatprep.subr.mxu0 0.0
    %147 = vmatpush2.msra.mxu0 0.0
    %148 = vmatprep.subr.mxu0 0.0
    %149 = vmatpush2.msra.mxu0 0.0
    %150 = vmatprep.subr.mxu0 0.0
    %151 = vmatpush2.msra.mxu0 0.0
    %152 = vmatprep.subr.mxu0 0.0
    %153 = vmatpush2.msra.mxu0 0.0
    %154 = vmatprep.subr.mxu0 0.0
    %155 = vmatpush2.msra.mxu0 0.0
    %156 = vmatprep.subr.mxu0 0.0
    %157 = vmatpush2.msra.mxu0 0.0
    %158 = vmatprep.subr.mxu0 0.0
    %159 = vmatpush2.msra.mxu0 0.0
    %160 = vmatprep.subr.mxu0 0.0
    %161 = vmatpush2.msra.mxu0 0.0
    %162 = vmatprep.subr.mxu0 0.0
    %163 = vmatpush2.msra.mxu0 0.0
    %164 = vmatprep.subr.mxu0 0.0
    %165 = vmatpush2.msra.mxu0 0.0
    %166 = vmatprep.subr.mxu0 0.0
    %167 = vmatpush2.msra.mxu0 0.0
    %168 = vmatprep.mubr.f32.mxu0 0.0
    %169 = vmatmul.mubr.f32.gmra.mxu0 %v102
    %v170 = vpop.f32.mrf.mxu0
    %v171 = vadd.f32 %v93, %v170
    %v172 = vpop.f32.mrf.mxu0
    %v173 = vadd.f32 %v97, %v172
    %174 = vdwg.mxu0
    %v175 = vlaneseq
    %v176 = vand.u32 %v175, 127
    %v177 = vadd.s32 %v176, 128
    %vm178 = vcmp.lt.s32.totalorder %v176, 128
    %vm179 = vcmp.lt.s32.totalorder %v177, 128
    %v180 = vmax.f32 %v171, 0.0
    %v181 = vmax.f32 %v173, 0.0
    %v182 = vsel %vm178, %v180, %v171
    %v183 = vsel %vm179, %v181, %v173
    %184 = vmatprep.subr.mxu0 0.0
    %185 = vmatpush1.msra.mxu0 %v71
    %186 = vmatprep.subr.mxu0 0.0
    %187 = vmatpush1.msra.mxu0 %v70
    %188 = vmatprep.subr.mxu0 0.0
    %189 = vmatpush1.msra.mxu0 %v69
    %190 = vmatprep.subr.mxu0 0.0
    %191 = vmatpush1.msra.mxu0 %v68
    %192 = vmatprep.subr.mxu0 0.0
    %193 = vmatpush1.msra.mxu0 %v67
    %194 = vmatprep.subr.mxu0 0.0
    %195 = vmatpush1.msra.mxu0 %v66
    %196 = vmatprep.subr.mxu0 0.0
    %197 = vmatpush1.msra.mxu0 %v65
    %198 = vmatprep.subr.mxu0 0.0
    %199 = vmatpush1.msra.mxu0 %v64
    %200 = vmatprep.subr.mxu0 0.0
    %201 = vmatpush1.msra.mxu0 %v63
    %202 = vmatprep.subr.mxu0 0.0
    %203 = vmatpush1.msra.mxu0 %v62
    %204 = vmatprep.subr.mxu0 0.0
    %205 = vmatpush1.msra.mxu0 %v61
    %206 = vmatprep.subr.mxu0 0.0
    %207 = vmatpush1.msra.mxu0 %v60
    %208 = vmatprep.subr.mxu0 0.0
    %209 = vmatpush1.msra.mxu0 %v59
    %210 = vmatprep.subr.mxu0 0.0
    %211 = vmatpush1.msra.mxu0 %v58
    %212 = vmatprep.subr.mxu0 0.0
    %213 = vmatpush1.msra.mxu0 %v57
    %214 = vmatprep.subr.mxu0 0.0
    %215 = vmatpush1.msra.mxu0 %v56
    %216 = vmatprep.subr.mxu0 0.0
    %217 = vmatpush2.msra.mxu0 %v87
    %218 = vmatprep.subr.mxu0 0.0
    %219 = vmatpush2.msra.mxu0 %v86
    %220 = vmatprep.subr.mxu0 0.0
    %221 = vmatpush2.msra.mxu0 %v85
    %222 = vmatprep.subr.mxu0 0.0
    %223 = vmatpush2.msra.mxu0 %v84
    %224 = vmatprep.subr.mxu0 0.0
    %225 = vmatpush2.msra.mxu0 %v83
    %226 = vmatprep.subr.mxu0 0.0
    %227 = vmatpush2.msra.mxu0 %v82
    %228 = vmatprep.subr.mxu0 0.0
    %229 = vmatpush2.msra.mxu0 %v81
    %230 = vmatprep.subr.mxu0 0.0
    %231 = vmatpush2.msra.mxu0 %v80
    %232 = vmatprep.subr.mxu0 0.0
    %233 = vmatpush2.msra.mxu0 %v79
    %234 = vmatprep.subr.mxu0 0.0
    %235 = vmatpush2.msra.mxu0 %v78
    %236 = vmatprep.subr.mxu0 0.0
    %237 = vmatpush2.msra.mxu0 %v77
    %238 = vmatprep.subr.mxu0 0.0
    %239 = vmatpush2.msra.mxu0 %v76
    %240 = vmatprep.subr.mxu0 0.0
    %241 = vmatpush2.msra.mxu0 %v75
    %242 = vmatprep.subr.mxu0 0.0
    %243 = vmatpush2.msra.mxu0 %v74
    %244 = vmatprep.subr.mxu0 0.0
    %245 = vmatpush2.msra.mxu0 %v73
    %246 = vmatprep.subr.mxu0 0.0
    %247 = vmatpush2.msra.mxu0 %v72
    %248 = vmatprep.mubr.f32.mxu0 %v183
    %249 = vmatmul.mubr.f32.gmra.mxu0 %v182
    %v250 = vpop.f32.mrf.mxu0
    %v251 = vadd.f32 0.0, %v250
    %v252 = vpop.f32.mrf.mxu0
    %253 = vdwg.mxu0
    %254 = vst [vmem:[#allocation7] sm:$0xff] %v251
    // Predicated region
    $region18: #{tpu_custom_call.1} parent=1 // pred_check
      _
    $region19: #{tpu_custom_call.1} parent=1 // pred_check_branch
      %256 = sbr.rel (0) target = $region21
    $region20: #{tpu_custom_call.1} parent=1 // pred_region
      %s258 = ssub.s32 128, 128
      %259 = vsyncadd [#allocation4], %s258
      %s261 = sshll.u32 [#allocation7], 4
      %s262 = int_to_ptr.vmem [resolvable:$true] %s261
      %264 = dma.vmem_to_hbm [thread:$0]  %s262, 128, %s2, [#allocation4]
    $region21: #{tpu_custom_call.1} parent=1 // pred_fallthru
      _
    // Predicated region
    $region22: #{tpu_custom_call.1} parent=1 // pred_check
      _
    $region23: #{tpu_custom_call.1} parent=1 // pred_check_branch
      %266 = sbr.rel (0) target = $region25
    $region24: #{tpu_custom_call.1} parent=1 // pred_region
      %267 = dma.done [#allocation4], 128
    $region25: #{tpu_custom_call.1} parent=1 // pred_fallthru
      _
    %268 = vsyncpa [#allocation3], 1
    %269 = vsyncpa [#allocation6], 1
    %270 = vsyncpa [#allocation4], 1

</llo_original>
